<compile_context>
chip_gen: v5e
topology: v5e:2x2
jax: 0.10.0
libtpu: 0.0.40
codegen_flags: <defaults>
</compile_context>

<pallas_src>
import functools

import jax
import jax.numpy as jnp
from jax.experimental import pallas as pl
from jax.experimental.pallas import tpu as pltpu


def _round_up(x, m):
    return ((x + m - 1) // m) * m


def node_model_kernel(col_ref, x_ref, ea_ref, w1x_ref, w1a_ref, w2_ref,
                      par_ref, out_ref, acc_ref, *, H):
    """One (node-tile i, edge-chunk e) grid step."""
    e = pl.program_id(1)
    num_e = pl.num_programs(1)

    TM, HP = out_ref.shape
    EC = col_ref.shape[1]
    HOP = par_ref.shape[1]
    H2 = 2 * H

    # ---- init the scatter accumulator on the first edge chunk ----
    @pl.when(e == 0)
    def _init():
        acc_ref[...] = jnp.zeros_like(acc_ref)

    # ---- scatter-sum for this (node tile, edge chunk) block via the MXU ----
    # onehot[n, e] = 1 iff col[e] == global node id of local row n.
    row_base = pl.program_id(0) * TM
    node_ids = jax.lax.broadcasted_iota(jnp.int32, (TM, EC), 0) + row_base
    onehot = (node_ids == col_ref[...]).astype(ea_ref.dtype)        # (TM, EC)
    # [sums | counts] += onehot @ [edge_attr | 1]  -> (TM, HP), f32 accumulate.
    acc_ref[...] += jnp.dot(onehot, ea_ref[...],
                            preferred_element_type=jnp.float32)

    # ---- last edge chunk: finish scatter-mean and run node_mlp_2 ----
    @pl.when(e == num_e - 1)
    def _finish():
        acc = acc_ref[...]                                          # (TM, HP)
        counts = acc[:, H:H + 1]                                    # ones-lane
        inv = pl.reciprocal(jnp.maximum(counts, 1.0), approx=True)  # EUP
        agg = (acc * inv).astype(x_ref.dtype)  # empty nodes stay exactly 0

        # Linear(2H, 2H) split as x @ W1x + agg @ W1a  (weights pre-transposed
        # and zero-padded on the host, so count/pad lanes cannot leak in).
        h = jnp.dot(x_ref[...], w1x_ref[...],
                    preferred_element_type=jnp.float32)
        h = h + jnp.dot(agg, w1a_ref[...],
                        preferred_element_type=jnp.float32)
        h = h + par_ref[0:1, :]                                     # b1

        # LayerNorm over the 2H real lanes (padded lanes of h are exactly 0).
        mu = jnp.sum(h, axis=-1, keepdims=True) * (1.0 / H2)
        diff = h - mu
        if H2 != HOP:
            lane = jax.lax.broadcasted_iota(jnp.int32, h.shape, 1)
            diff = diff * (lane < H2).astype(jnp.float32)
        var = jnp.sum(diff * diff, axis=-1, keepdims=True) * (1.0 / H2)
        h = diff * jax.lax.rsqrt(var + 1e-5) * par_ref[1:2, :] + par_ref[2:3, :]

        # PReLU (single shared weight).
        a = par_ref[4:5, 0:1]
        h = jnp.where(h > 0, h, a * h)

        # Linear(2H, H).
        out = jnp.dot(h.astype(w2_ref.dtype), w2_ref[...],
                      preferred_element_type=jnp.float32)
        out_ref[...] = out + par_ref[3:4, :HP]                      # b2


def node_model_forward(x, col, edge_attr, params, *,
                       use_bf16=True, tm=256, ec=512):
    N, H = x.shape
    E = edge_attr.shape[0]
    H2 = 2 * H
    w1, b1, lnw, lnb, a, w2, b2 = params

    # Lane-dense padding; column H of the feature lanes carries the edge count.
    HP = _round_up(H + 1, 128)      # node / edge feature lanes (+count lane)
    HOP = _round_up(H2, 128)        # Linear1 output lanes

    TM = min(_round_up(tm, 8), _round_up(N, 8))       # node-row tile
    EC = min(_round_up(ec, 128), _round_up(E, 128))   # edge reduction chunk
    NP = _round_up(N, TM)
    EP = _round_up(E, EC)

    compute_dtype = jnp.bfloat16 if use_bf16 else jnp.float32

    # --- node features: (NP, HP), zeros in padded rows/lanes ---
    x_pad = jnp.zeros((NP, HP), jnp.float32).at[:N, :H].set(
        x.astype(jnp.float32)).astype(compute_dtype)

    # --- edge features augmented with a ones count-lane at column H ---
    ea_aug = jnp.zeros((EP, HP), jnp.float32)
    ea_aug = ea_aug.at[:E, :H].set(edge_attr.astype(jnp.float32))
    ea_aug = ea_aug.at[:E, H].set(1.0)
    ea_aug = ea_aug.astype(compute_dtype)

    # --- col indices as a lane-vector; padded edges get -1 (hit no node) ---
    col_pad = jnp.full((1, EP), -1, jnp.int32).at[0, :E].set(
        col.astype(jnp.int32))

    # --- pad + pre-transpose weights (fold the .T into host-side prep) ---
    w1f = w1.astype(jnp.float32)
    w1x_t = jnp.zeros((HP, HOP), jnp.float32).at[:H, :H2].set(
        w1f[:, :H].T).astype(compute_dtype)             # x half of concat
    w1a_t = jnp.zeros((HP, HOP), jnp.float32).at[:H, :H2].set(
        w1f[:, H:].T).astype(compute_dtype)             # agg half of concat
    w2_t = jnp.zeros((HOP, HP), jnp.float32).at[:H2, :H].set(
        w2.astype(jnp.float32).T).astype(compute_dtype)

    # --- pack the small per-lane params into one (8, HOP) VMEM table ---
    par = jnp.zeros((8, HOP), jnp.float32)
    par = par.at[0, :H2].set(b1.astype(jnp.float32))
    par = par.at[1, :H2].set(lnw.astype(jnp.float32))
    par = par.at[2, :H2].set(lnb.astype(jnp.float32))
    par = par.at[3, :H].set(b2.astype(jnp.float32))
    par = par.at[4, 0].set(jnp.asarray(a, jnp.float32).reshape(-1)[0])

    grid = (NP // TM, EP // EC)   # (node tiles [parallel], edge chunks [reduction])

    out_pad = pl.pallas_call(
        functools.partial(node_model_kernel, H=H),
        out_shape=jax.ShapeDtypeStruct((NP, HP), jnp.float32),
        grid=grid,
        in_specs=[
            pl.BlockSpec((1, EC), lambda i, e: (0, e)),       # col chunk
            pl.BlockSpec((TM, HP), lambda i, e: (i, 0)),      # x tile
            pl.BlockSpec((EC, HP), lambda i, e: (e, 0)),      # edge_attr chunk
            pl.BlockSpec((HP, HOP), lambda i, e: (0, 0)),     # W1x^T (padded)
            pl.BlockSpec((HP, HOP), lambda i, e: (0, 0)),     # W1a^T (padded)
            pl.BlockSpec((HOP, HP), lambda i, e: (0, 0)),     # W2^T  (padded)
            pl.BlockSpec((8, HOP), lambda i, e: (0, 0)),      # packed params
        ],
        out_specs=pl.BlockSpec((TM, HP), lambda i, e: (i, 0)),
        scratch_shapes=[pltpu.VMEM((TM, HP), jnp.float32)],   # [sums | counts]
        compiler_params=pltpu.CompilerParams(
            dimension_semantics=("parallel", "arbitrary")),
    )(col_pad, x_pad, ea_aug, w1x_t, w1a_t, w2_t, par)

    return out_pad[:N, :H]


def reference_forward(x, col, edge_attr, params):
    """Pure-JAX reference matching the PyTorch NodeModel semantics."""
    N, H = x.shape
    w1, b1, lnw, lnb, a, w2, b2 = params
    sums = jax.ops.segment_sum(edge_attr, col, num_segments=N)
    counts = jax.ops.segment_sum(jnp.ones((edge_attr.shape[0],), jnp.float32),
                                 col, num_segments=N)[:, None]
    agg = jnp.where(counts > 0, sums / jnp.maximum(counts, 1.0), 0.0)
    cat = jnp.concatenate([x, agg], axis=1)
    h = cat @ w1.T + b1
    mu = jnp.mean(h, axis=-1, keepdims=True)
    var = jnp.mean((h - mu) ** 2, axis=-1, keepdims=True)
    h = (h - mu) / jnp.sqrt(var + 1e-5) * lnw + lnb
    h = jnp.where(h > 0, h, a * h)
    return h @ w2.T + b2


def _make_params(key, H):
    H2 = 2 * H
    k_w1, k_b1, k_w2, k_b2 = jax.random.split(key, 4)
    w1 = jax.random.normal(k_w1, (H2, H2), jnp.float32) * 0.1
    b1 = jax.random.normal(k_b1, (H2,), jnp.float32) * 0.1
    lnw = jnp.ones((H2,), jnp.float32)
    lnb = jnp.zeros((H2,), jnp.float32)
    a = jnp.array([0.25], jnp.float32)          # PReLU default init
    w2 = jax.random.normal(k_w2, (H, H2), jnp.float32) * 0.1
    b2 = jax.random.normal(k_b2, (H,), jnp.float32) * 0.1
    return (w1, b1, lnw, lnb, a, w2, b2)


if __name__ == "__main__":
    key = jax.random.PRNGKey(0)

    # ---- test 1: module-sized toy graph (single tile) ----
    N, H, E = 8, 32, 16
    k_x, k_ea, k_col, k_p = jax.random.split(key, 4)
    x = jax.random.normal(k_x, (N, H), jnp.float32)
    edge_attr = jax.random.normal(k_ea, (E, H), jnp.float32)
    col = jax.random.randint(k_col, (E,), 0, N, jnp.int32)
    params = _make_params(k_p, H)

    ref = reference_forward(x, col, edge_attr, params)

    out_f32 = jax.block_until_ready(
        node_model_forward(x, col, edge_attr, params, use_bf16=False))
    assert out_f32.shape == (N, H)
    assert jnp.allclose(out_f32, ref, rtol=1e-2, atol=1e-2), "f32 mismatch"

    out_bf16 = jax.block_until_ready(
        node_model_forward(x, col, edge_attr, params, use_bf16=True))
    assert jnp.allclose(out_bf16, ref, rtol=5e-2, atol=5e-2), "bf16 mismatch"

    # ---- test 2: multi-tile grid (3 node tiles x 2 edge chunks) ----
    N2, E2 = 70, 200
    k_x2, k_ea2, k_col2 = jax.random.split(jax.random.PRNGKey(1), 3)
    x2 = jax.random.normal(k_x2, (N2, H), jnp.float32)
    ea2 = jax.random.normal(k_ea2, (E2, H), jnp.float32)
    col2 = jax.random.randint(k_col2, (E2,), 0, N2, jnp.int32)

    ref2 = reference_forward(x2, col2, ea2, params)
    out2 = jax.block_until_ready(
        node_model_forward(x2, col2, ea2, params, use_bf16=False, tm=32, ec=64))
    assert out2.shape == (N2, H)
    assert jnp.allclose(out2, ref2, rtol=1e-2, atol=1e-2), "tiled mismatch"

    print("KERNEL_OK")
</pallas_src>

<mosaic_0001>
module attributes {stable_mosaic.version = 11 : i64} {
  func.func @node_model_kernel(%arg0: i32, %arg1: i32, %arg2: memref<1x128xi32, #tpu.memory_space<vmem>>, %arg3: memref<8x128xf32, #tpu.memory_space<vmem>>, %arg4: memref<128x128xf32, #tpu.memory_space<vmem>>, %arg5: memref<128x128xf32, #tpu.memory_space<vmem>>, %arg6: memref<128x128xf32, #tpu.memory_space<vmem>>, %arg7: memref<128x128xf32, #tpu.memory_space<vmem>>, %arg8: memref<8x128xf32, #tpu.memory_space<vmem>>, %arg9: memref<8x128xf32, #tpu.memory_space<vmem>>, %arg10: memref<8x128xf32, #tpu.memory_space<vmem>>) attributes {dimension_semantics = [#tpu.dimension_semantics<parallel>, #tpu.dimension_semantics<arbitrary>], iteration_bounds = array<i64: 1, 1>, scalar_prefetch = 0 : i64, scratch_operands = 1 : i64, tpu.core_type = #tpu.core_type<tc>, window_params = [{transform_indices = @transform_0, window_bounds = array<i64: 1, 128>}, {transform_indices = @transform_1, window_bounds = array<i64: 8, 128>}, {transform_indices = @transform_2, window_bounds = array<i64: 128, 128>}, {pipeline_mode = #tpu.pipeline_mode<synchronous>, transform_indices = @transform_3, window_bounds = array<i64: 128, 128>}, {pipeline_mode = #tpu.pipeline_mode<synchronous>, transform_indices = @transform_4, window_bounds = array<i64: 128, 128>}, {pipeline_mode = #tpu.pipeline_mode<synchronous>, transform_indices = @transform_5, window_bounds = array<i64: 128, 128>}, {pipeline_mode = #tpu.pipeline_mode<synchronous>, transform_indices = @transform_6, window_bounds = array<i64: 8, 128>}, {transform_indices = @transform_7, window_bounds = array<i64: 8, 128>}]} {
    %c0_i32 = arith.constant 0 : i32
    %0 = arith.cmpi eq, %arg1, %c0_i32 : i32
    %1 = arith.extui %0 : i1 to i32
    %c0_i32_0 = arith.constant 0 : i32
    %2 = arith.cmpi ne, %1, %c0_i32_0 : i32
    scf.if %2 {
      %cst_10 = arith.constant 0.000000e+00 : f32
      %20 = vector.broadcast %cst_10 : f32 to vector<8x128xf32>
      %c0_11 = arith.constant 0 : index
      %c0_12 = arith.constant 0 : index
      %21 = vector.load %arg10[%c0_11, %c0_12] : memref<8x128xf32, #tpu.memory_space<vmem>>, vector<8x128xf32>
      tpu.vector_store %arg10[%c0_11, %c0_12], %20 {strides = array<i32>} : memref<8x128xf32, #tpu.memory_space<vmem>>, vector<8x128xf32>,
    } else {
    }
    %c8_i32 = arith.constant 8 : i32
    %3 = arith.muli %arg0, %c8_i32 : i32
    %4 = tpu.iota {dimensions = array<i32: 0>} : vector<8x128xi32>
    %5 = vector.broadcast %3 : i32 to vector<8x128xi32>
    %6 = arith.addi %4, %5 : vector<8x128xi32>
    %c0 = arith.constant 0 : index
    %c0_1 = arith.constant 0 : index
    %7 = vector.load %arg2[%c0, %c0_1] : memref<1x128xi32, #tpu.memory_space<vmem>>, vector<1x128xi32>
    %8 = vector.broadcast %7 : vector<1x128xi32> to vector<8x128xi32>
    %9 = arith.cmpi eq, %6, %8 : vector<8x128xi32>
    %10 = arith.extui %9 : vector<8x128xi1> to vector<8x128xi32>
    %11 = arith.sitofp %10 : vector<8x128xi32> to vector<8x128xf32>
    %c0_2 = arith.constant 0 : index
    %c0_3 = arith.constant 0 : index
    %12 = vector.load %arg10[%c0_2, %c0_3] : memref<8x128xf32, #tpu.memory_space<vmem>>, vector<8x128xf32>
    %c0_4 = arith.constant 0 : index
    %c0_5 = arith.constant 0 : index
    %13 = vector.load %arg4[%c0_4, %c0_5] : memref<128x128xf32, #tpu.memory_space<vmem>>, vector<128x128xf32>
    %cst = arith.constant dense<0.000000e+00> : vector<8x128xf32>
    %14 = tpu.matmul %11, %13, %cst {dimension_numbers = #tpu.dot_dimension_numbers<[1], [0], [0], [1], [0, 0, 1, 1], [], []>} : vector<8x128xf32>, vector<128x128xf32>, vector<8x128xf32> -> vector<8x128xf32>
    %15 = arith.addf %12, %14 : vector<8x128xf32>
    %c0_6 = arith.constant 0 : index
    %c0_7 = arith.constant 0 : index
    %16 = vector.load %arg10[%c0_6, %c0_7] : memref<8x128xf32, #tpu.memory_space<vmem>>, vector<8x128xf32>
    tpu.vector_store %arg10[%c0_6, %c0_7], %15 {strides = array<i32>} : memref<8x128xf32, #tpu.memory_space<vmem>>, vector<8x128xf32>,
    %c0_i32_8 = arith.constant 0 : i32
    %17 = arith.cmpi eq, %arg1, %c0_i32_8 : i32
    %18 = arith.extui %17 : i1 to i32
    %c0_i32_9 = arith.constant 0 : i32
    %19 = arith.cmpi ne, %18, %c0_i32_9 : i32
    scf.if %19 {
      %c0_10 = arith.constant 0 : index
      %c0_11 = arith.constant 0 : index
      %20 = vector.load %arg10[%c0_10, %c0_11] : memref<8x128xf32, #tpu.memory_space<vmem>>, vector<8x128xf32>
      %21 = vector.extract_strided_slice %20 {offsets = [0, 32], sizes = [8, 1], strides = [1, 1]} : vector<8x128xf32> to vector<8x1xf32>
      %cst_12 = arith.constant 1.000000e+00 : f32
      %22 = vector.broadcast %cst_12 : f32 to vector<8x1xf32>
      %23 = arith.maximumf %21, %22 : vector<8x1xf32>
      %24 = tpu.reciprocal %23 {approx = true} : vector<8x1xf32> -> vector<8x1xf32>
      %25 = vector.broadcast %24 : vector<8x1xf32> to vector<8x128xf32>
      %26 = arith.mulf %20, %25 : vector<8x128xf32>
      %c0_13 = arith.constant 0 : index
      %c0_14 = arith.constant 0 : index
      %27 = vector.load %arg3[%c0_13, %c0_14] : memref<8x128xf32, #tpu.memory_space<vmem>>, vector<8x128xf32>
      %c0_15 = arith.constant 0 : index
      %c0_16 = arith.constant 0 : index
      %28 = vector.load %arg5[%c0_15, %c0_16] : memref<128x128xf32, #tpu.memory_space<vmem>>, vector<128x128xf32>
      %cst_17 = arith.constant dense<0.000000e+00> : vector<8x128xf32>
      %29 = tpu.matmul %27, %28, %cst_17 {dimension_numbers = #tpu.dot_dimension_numbers<[1], [0], [0], [1], [0, 0, 1, 1], [], []>} : vector<8x128xf32>, vector<128x128xf32>, vector<8x128xf32> -> vector<8x128xf32>
      %c0_18 = arith.constant 0 : index
      %c0_19 = arith.constant 0 : index
      %30 = vector.load %arg6[%c0_18, %c0_19] : memref<128x128xf32, #tpu.memory_space<vmem>>, vector<128x128xf32>
      %cst_20 = arith.constant dense<0.000000e+00> : vector<8x128xf32>
      %31 = tpu.matmul %26, %30, %cst_20 {dimension_numbers = #tpu.dot_dimension_numbers<[1], [0], [0], [1], [0, 0, 1, 1], [], []>} : vector<8x128xf32>, vector<128x128xf32>, vector<8x128xf32> -> vector<8x128xf32>
      %32 = arith.addf %29, %31 : vector<8x128xf32>
      %c0_21 = arith.constant 0 : index
      %c0_22 = arith.constant 0 : index
      %33 = vector.load %arg8[%c0_21, %c0_22] : memref<8x128xf32, #tpu.memory_space<vmem>>, vector<1x128xf32>
      %34 = vector.broadcast %33 : vector<1x128xf32> to vector<8x128xf32>
      %35 = arith.addf %32, %34 : vector<8x128xf32>
      %cst_23 = arith.constant dense<0.000000e+00> : vector<8xf32>
      %36 = vector.multi_reduction <add>, %35, %cst_23 [1] : vector<8x128xf32> to vector<8xf32>
      %37 = vector.shape_cast %36 : vector<8xf32> to vector<8x1xf32>
      %cst_24 = arith.constant 1.562500e-02 : f32
      %38 = vector.broadcast %cst_24 : f32 to vector<8x1xf32>
      %39 = arith.mulf %37, %38 : vector<8x1xf32>
      %40 = vector.broadcast %39 : vector<8x1xf32> to vector<8x128xf32>
      %41 = arith.subf %35, %40 : vector<8x128xf32>
      %42 = tpu.iota {dimensions = array<i32: 1>} : vector<8x128xi32>
      %c64_i32 = arith.constant 64 : i32
      %43 = vector.broadcast %c64_i32 : i32 to vector<8x128xi32>
      %44 = arith.cmpi slt, %42, %43 : vector<8x128xi32>
      %45 = arith.extui %44 : vector<8x128xi1> to vector<8x128xi32>
      %46 = arith.sitofp %45 : vector<8x128xi32> to vector<8x128xf32>
      %47 = arith.mulf %41, %46 : vector<8x128xf32>
      %48 = arith.mulf %47, %47 : vector<8x128xf32>
      %cst_25 = arith.constant dense<0.000000e+00> : vector<8xf32>
      %49 = vector.multi_reduction <add>, %48, %cst_25 [1] : vector<8x128xf32> to vector<8xf32>
      %50 = vector.shape_cast %49 : vector<8xf32> to vector<8x1xf32>
      %cst_26 = arith.constant 1.562500e-02 : f32
      %51 = vector.broadcast %cst_26 : f32 to vector<8x1xf32>
      %52 = arith.mulf %50, %51 : vector<8x1xf32>
      %cst_27 = arith.constant 9.99999974E-6 : f32
      %53 = vector.broadcast %cst_27 : f32 to vector<8x1xf32>
      %54 = arith.addf %52, %53 : vector<8x1xf32>
      %55 = math.rsqrt %54 : vector<8x1xf32>
      %56 = vector.broadcast %55 : vector<8x1xf32> to vector<8x128xf32>
      %57 = arith.mulf %47, %56 : vector<8x128xf32>
      %c1 = arith.constant 1 : index
      %c0_28 = arith.constant 0 : index
      %58 = vector.load %arg8[%c1, %c0_28] : memref<8x128xf32, #tpu.memory_space<vmem>>, vector<1x128xf32>
      %59 = vector.broadcast %58 : vector<1x128xf32> to vector<8x128xf32>
      %60 = arith.mulf %57, %59 : vector<8x128xf32>
      %c2 = arith.constant 2 : index
      %c0_29 = arith.constant 0 : index
      %61 = vector.load %arg8[%c2, %c0_29] : memref<8x128xf32, #tpu.memory_space<vmem>>, vector<1x128xf32>
      %62 = vector.broadcast %61 : vector<1x128xf32> to vector<8x128xf32>
      %63 = arith.addf %60, %62 : vector<8x128xf32>
      %c4 = arith.constant 4 : index
      %c0_30 = arith.constant 0 : index
      %64 = vector.load %arg8[%c4, %c0_30] : memref<8x128xf32, #tpu.memory_space<vmem>>, vector<1x1xf32>
      %cst_31 = arith.constant 0.000000e+00 : f32
      %65 = vector.broadcast %cst_31 : f32 to vector<8x128xf32>
      %66 = arith.cmpf ogt, %63, %65 : vector<8x128xf32>
      %67 = vector.broadcast %64 : vector<1x1xf32> to vector<8x128xf32>
      %68 = arith.mulf %67, %63 : vector<8x128xf32>
      %69 = arith.select %66, %63, %68 : vector<8x128xi1>, vector<8x128xf32>
      %c0_32 = arith.constant 0 : index
      %c0_33 = arith.constant 0 : index
      %70 = vector.load %arg7[%c0_32, %c0_33] : memref<128x128xf32, #tpu.memory_space<vmem>>, vector<128x128xf32>
      %cst_34 = arith.constant dense<0.000000e+00> : vector<8x128xf32>
      %71 = tpu.matmul %69, %70, %cst_34 {dimension_numbers = #tpu.dot_dimension_numbers<[1], [0], [0], [1], [0, 0, 1, 1], [], []>} : vector<8x128xf32>, vector<128x128xf32>, vector<8x128xf32> -> vector<8x128xf32>
      %c3 = arith.constant 3 : index
      %c0_35 = arith.constant 0 : index
      %72 = vector.load %arg8[%c3, %c0_35] : memref<8x128xf32, #tpu.memory_space<vmem>>, vector<1x128xf32>
      %73 = vector.broadcast %72 : vector<1x128xf32> to vector<8x128xf32>
      %74 = arith.addf %71, %73 : vector<8x128xf32>
      %c0_36 = arith.constant 0 : index
      %c0_37 = arith.constant 0 : index
      %75 = vector.load %arg9[%c0_36, %c0_37] : memref<8x128xf32, #tpu.memory_space<vmem>>, vector<8x128xf32>
      tpu.vector_store %arg9[%c0_36, %c0_37], %74 {strides = array<i32>} : memref<8x128xf32, #tpu.memory_space<vmem>>, vector<8x128xf32>,
    } else {
    }
    return
  }
  func.func @transform_0(%arg0: i32, %arg1: i32) -> (i32, i32) {
    %c0_i32 = arith.constant 0 : i32
    %c0_i32_0 = arith.constant 0 : i32
    return %c0_i32, %arg1 : i32, i32
  }
  func.func @transform_1(%arg0: i32, %arg1: i32) -> (i32, i32) {
    %c0_i32 = arith.constant 0 : i32
    %c0_i32_0 = arith.constant 0 : i32
    return %arg0, %c0_i32 : i32, i32
  }
  func.func @transform_2(%arg0: i32, %arg1: i32) -> (i32, i32) {
    %c0_i32 = arith.constant 0 : i32
    %c0_i32_0 = arith.constant 0 : i32
    return %arg1, %c0_i32 : i32, i32
  }
  func.func @transform_3(%arg0: i32, %arg1: i32) -> (i32, i32) {
    %c0_i32 = arith.constant 0 : i32
    %c0_i32_0 = arith.constant 0 : i32
    %c0_i32_1 = arith.constant 0 : i32
    return %c0_i32, %c0_i32_0 : i32, i32
  }
  func.func @transform_4(%arg0: i32, %arg1: i32) -> (i32, i32) {
    %c0_i32 = arith.constant 0 : i32
    %c0_i32_0 = arith.constant 0 : i32
    %c0_i32_1 = arith.constant 0 : i32
    return %c0_i32, %c0_i32_0 : i32, i32
  }
  func.func @transform_5(%arg0: i32, %arg1: i32) -> (i32, i32) {
    %c0_i32 = arith.constant 0 : i32
    %c0_i32_0 = arith.constant 0 : i32
    %c0_i32_1 = arith.constant 0 : i32
    return %c0_i32, %c0_i32_0 : i32, i32
  }
  func.func @transform_6(%arg0: i32, %arg1: i32) -> (i32, i32) {
    %c0_i32 = arith.constant 0 : i32
    %c0_i32_0 = arith.constant 0 : i32
    %c0_i32_1 = arith.constant 0 : i32
    return %c0_i32, %c0_i32_0 : i32, i32
  }
  func.func @transform_7(%arg0: i32, %arg1: i32) -> (i32, i32) {
    %c0_i32 = arith.constant 0 : i32
    %c0_i32_0 = arith.constant 0 : i32
    return %arg0, %c0_i32 : i32, i32
  }
}

</mosaic_0001>

<llo_original>
// kernel: tpu_custom_call.1
$region0: #{tpu_custom_call.1}
  #allocation0 [shape = 'u32[]', space=smem, size = 0x4, offset = 0x4, fixed_abs, tag = 'smem constant byte address 0x4 - core index']
  #allocation1 [shape = 'u32[72,128]{1,0:T(1,128)}', space=vmem, size = 0x9000, scoped, tag = 'internal scratch']
  #allocation2 [shape = 'f32[8,128]{1,0:T(8,128)}', space=vmem, size = 0x1000, scoped, tag = 'scratch operand']
  %s0 = inlined_call_operand.hbm [shape: s32[1,128], index: 0, kind: input, shape index: {}]
  %s1 = inlined_call_operand.hbm [shape: f32[8,128], index: 1, kind: input, shape index: {}]
  %s2 = inlined_call_operand.hbm [shape: f32[128,128], index: 2, kind: input, shape index: {}]
  %s3 = inlined_call_operand.hbm [shape: f32[128,128], index: 3, kind: input, shape index: {}]
  %s4 = inlined_call_operand.hbm [shape: f32[128,128], index: 4, kind: input, shape index: {}]
  %s5 = inlined_call_operand.hbm [shape: f32[128,128], index: 5, kind: input, shape index: {}]
  %s6 = inlined_call_operand.hbm [shape: f32[8,128], index: 6, kind: input, shape index: {}]
  %s7 = inlined_call_operand.hbm [shape: f32[8,128], index: 7, kind: output, shape index: {}]
  %s8 = sld [smem:[#allocation0]]
  $region74: #{tpu_custom_call.1} parent=0
    _
  %s10 = ssub.s32 1, %s8
  %s11 = scalar_select 0, %s10, %s8
  $region1: #{tpu_custom_call.1} parent=0
    #allocation3 [shape = 'u8[512]{0}', space=vmem, size = 0x400, scoped, tag = 'input window, operand 0, single buffered']
    #allocation4 [shape = 's32[1]{0}', space=sflag, size = 0x4, scoped, tag = 'scoped memory for tpu_custom_call.1']
    #allocation5 [shape = 's32[1]{0}', space=sflag, size = 0x4, scoped, tag = 'scoped memory for tpu_custom_call.1']
    #allocation6 [shape = 'u8[4096]{0}', space=vmem, size = 0x1000, scoped, tag = 'input window, operand 1, single buffered']
    #allocation7 [shape = 's32[1]{0}', space=sflag, size = 0x4, scoped, tag = 'scoped memory for tpu_custom_call.1']
    #allocation8 [shape = 'u8[65536]{0}', space=vmem, size = 0x10000, scoped, tag = 'input window, operand 2, single buffered']
    #allocation9 [shape = 'u8[65536]{0}', space=vmem, size = 0x10000, scoped, tag = 'input window, operand 3, single buffered']
    #allocation10 [shape = 's32[1]{0}', space=sflag, size = 0x4, scoped, tag = 'scoped memory for tpu_custom_call.1']
    #allocation11 [shape = 'u8[65536]{0}', space=vmem, size = 0x10000, scoped, tag = 'input window, operand 4, single buffered']
    #allocation12 [shape = 'u8[65536]{0}', space=vmem, size = 0x10000, scoped, tag = 'input window, operand 5, single buffered']
    #allocation13 [shape = 's32[1]{0}', space=sflag, size = 0x4, scoped, tag = 'scoped memory for tpu_custom_call.1']
    #allocation14 [shape = 'u8[4096]{0}', space=vmem, size = 0x1000, scoped, tag = 'input window, operand 6, single buffered']
    #allocation15 [shape = 'u8[4096]{0}', space=vmem, size = 0x1000, scoped, tag = 'output window, operand 0, single buffered']
    %12 = vsyncpa [#allocation4], 0
    %13 = vsyncpa [#allocation7], 0
    %14 = vsyncpa [#allocation10], 0
    %15 = vsyncpa [#allocation13], 0
    %16 = vsyncpa [#allocation5], 0
    // Predicated region
    $region2: #{tpu_custom_call.1} parent=1 // pred_check
      _
    $region3: #{tpu_custom_call.1} parent=1 // pred_check_branch
      %18 = sbr.rel (0) target = $region5
    $region4: #{tpu_custom_call.1} parent=1 // pred_region
      %20 = vsyncadd [#allocation4], 0
      %s22 = sshll.u32 %s0, 4
      %s23 = int_to_ptr.hbm [resolvable:$true] %s22
      %s24 = sshll.u32 [#allocation3], 4
      %s25 = int_to_ptr.vmem [resolvable:$true] %s24
      %27 = dma.hbm_to_vmem [thread:$0]  %s23, 16, %s25, [#allocation4]
    $region5: #{tpu_custom_call.1} parent=1 // pred_fallthru
      _
    // Predicated region
    $region6: #{tpu_custom_call.1} parent=1 // pred_check
      _
    $region7: #{tpu_custom_call.1} parent=1 // pred_check_branch
      %29 = sbr.rel (0) target = $region9
    $region8: #{tpu_custom_call.1} parent=1 // pred_region
      %31 = vsyncadd [#allocation7], 0
      %s33 = sshll.u32 %s1, 4
      %s34 = int_to_ptr.hbm [resolvable:$true] %s33
      %s35 = sshll.u32 [#allocation6], 4
      %s36 = int_to_ptr.vmem [resolvable:$true] %s35
      %38 = dma.hbm_to_vmem [thread:$0]  %s34, 128, %s36, [#allocation7]
    $region9: #{tpu_custom_call.1} parent=1 // pred_fallthru
      _
    // Predicated region
    $region10: #{tpu_custom_call.1} parent=1 // pred_check
      _
    $region11: #{tpu_custom_call.1} parent=1 // pred_check_branch
      %40 = sbr.rel (0) target = $region13
    $region12: #{tpu_custom_call.1} parent=1 // pred_region
      %42 = vsyncadd [#allocation7], 0
      %s43 = sshll.u32 %s2, 4
      %s44 = int_to_ptr.hbm [resolvable:$true] %s43
      %s45 = sshll.u32 [#allocation8], 4
      %s46 = int_to_ptr.vmem [resolvable:$true] %s45
      %51 = dma.hbm_to_vmem [thread:$0]  %s44, 2048, %s46, [#allocation7], 128, 128, 8
    $region13: #{tpu_custom_call.1} parent=1 // pred_fallthru
      _
    // Predicated region
    $region14: #{tpu_custom_call.1} parent=1 // pred_check
      _
    $region15: #{tpu_custom_call.1} parent=1 // pred_check_branch
      %53 = sbr.rel (0) target = $region17
    $region16: #{tpu_custom_call.1} parent=1 // pred_region
      %55 = vsyncadd [#allocation10], 0
      %s56 = sshll.u32 %s3, 4
      %s57 = int_to_ptr.hbm [resolvable:$true] %s56
      %s58 = sshll.u32 [#allocation9], 4
      %s59 = int_to_ptr.vmem [resolvable:$true] %s58
      %64 = dma.hbm_to_vmem [thread:$0]  %s57, 2048, %s59, [#allocation10], 128, 128, 8
    $region17: #{tpu_custom_call.1} parent=1 // pred_fallthru
      _
    // Predicated region
    $region18: #{tpu_custom_call.1} parent=1 // pred_check
      _
    $region19: #{tpu_custom_call.1} parent=1 // pred_check_branch
      %66 = sbr.rel (0) target = $region21
    $region20: #{tpu_custom_call.1} parent=1 // pred_region
      %68 = vsyncadd [#allocation10], 0
      %s69 = sshll.u32 %s4, 4
      %s70 = int_to_ptr.hbm [resolvable:$true] %s69
      %s71 = sshll.u32 [#allocation11], 4
      %s72 = int_to_ptr.vmem [resolvable:$true] %s71
      %77 = dma.hbm_to_vmem [thread:$0]  %s70, 2048, %s72, [#allocation10], 128, 128, 8
    $region21: #{tpu_custom_call.1} parent=1 // pred_fallthru
      _
    // Predicated region
    $region22: #{tpu_custom_call.1} parent=1 // pred_check
      _
    $region23: #{tpu_custom_call.1} parent=1 // pred_check_branch
      %79 = sbr.rel (0) target = $region25
    $region24: #{tpu_custom_call.1} parent=1 // pred_region
      %81 = vsyncadd [#allocation13], 0
      %s82 = sshll.u32 %s5, 4
      %s83 = int_to_ptr.hbm [resolvable:$true] %s82
      %s84 = sshll.u32 [#allocation12], 4
      %s85 = int_to_ptr.vmem [resolvable:$true] %s84
      %90 = dma.hbm_to_vmem [thread:$0]  %s83, 2048, %s85, [#allocation13], 128, 128, 8
    $region25: #{tpu_custom_call.1} parent=1 // pred_fallthru
      _
    // Predicated region
    $region26: #{tpu_custom_call.1} parent=1 // pred_check
      _
    $region27: #{tpu_custom_call.1} parent=1 // pred_check_branch
      %92 = sbr.rel (0) target = $region29
    $region28: #{tpu_custom_call.1} parent=1 // pred_region
      %94 = vsyncadd [#allocation13], 0
      %s96 = sshll.u32 %s6, 4
      %s97 = int_to_ptr.hbm [resolvable:$true] %s96
      %s98 = sshll.u32 [#allocation14], 4
      %s99 = int_to_ptr.vmem [resolvable:$true] %s98
      %101 = dma.hbm_to_vmem [thread:$0]  %s97, 128, %s99, [#allocation13]
    $region29: #{tpu_custom_call.1} parent=1 // pred_fallthru
      _
    // Predicated region
    $region30: #{tpu_custom_call.1} parent=1 // pred_check
      _
    $region31: #{tpu_custom_call.1} parent=1 // pred_check_branch
      %103 = sbr.rel (0) target = $region33
    $region32: #{tpu_custom_call.1} parent=1 // pred_region
      %105 = dma.done [#allocation4], 16
    $region33: #{tpu_custom_call.1} parent=1 // pred_fallthru
      _
    // Predicated region
    $region34: #{tpu_custom_call.1} parent=1 // pred_check
      _
    $region35: #{tpu_custom_call.1} parent=1 // pred_check_branch
      %107 = sbr.rel (0) target = $region37
    $region36: #{tpu_custom_call.1} parent=1 // pred_region
      %109 = dma.done [#allocation7], 128
    $region37: #{tpu_custom_call.1} parent=1 // pred_fallthru
      _
    // Predicated region
    $region38: #{tpu_custom_call.1} parent=1 // pred_check
      _
    $region39: #{tpu_custom_call.1} parent=1 // pred_check_branch
      %111 = sbr.rel (0) target = $region41
    $region40: #{tpu_custom_call.1} parent=1 // pred_region
      %113 = dma.done [#allocation7], 2048
    $region41: #{tpu_custom_call.1} parent=1 // pred_fallthru
      _
    // Predicated region
    $region42: #{tpu_custom_call.1} parent=1 // pred_check
      _
    $region43: #{tpu_custom_call.1} parent=1 // pred_check_branch
      %115 = sbr.rel (0) target = $region45
    $region44: #{tpu_custom_call.1} parent=1 // pred_region
      %117 = dma.done [#allocation10], 2048
    $region45: #{tpu_custom_call.1} parent=1 // pred_fallthru
      _
    // Predicated region
    $region46: #{tpu_custom_call.1} parent=1 // pred_check
      _
    $region47: #{tpu_custom_call.1} parent=1 // pred_check_branch
      %119 = sbr.rel (0) target = $region49
    $region48: #{tpu_custom_call.1} parent=1 // pred_region
      %121 = dma.done [#allocation10], 2048
    $region49: #{tpu_custom_call.1} parent=1 // pred_fallthru
      _
    // Predicated region
    $region50: #{tpu_custom_call.1} parent=1 // pred_check
      _
    $region51: #{tpu_custom_call.1} parent=1 // pred_check_branch
      %123 = sbr.rel (0) target = $region53
    $region52: #{tpu_custom_call.1} parent=1 // pred_region
      %125 = dma.done [#allocation13], 2048
    $region53: #{tpu_custom_call.1} parent=1 // pred_fallthru
      _
    // Predicated region
    $region54: #{tpu_custom_call.1} parent=1 // pred_check
      _
    $region55: #{tpu_custom_call.1} parent=1 // pred_check_branch
      %127 = sbr.rel (0) target = $region57
    $region56: #{tpu_custom_call.1} parent=1 // pred_region
      %129 = dma.done [#allocation13], 128
    $region57: #{tpu_custom_call.1} parent=1 // pred_fallthru
      _
    %p130 = scmp.eq.s32.totalorder 0, 0
    // Predicated region
    $region58: #{tpu_custom_call.1} parent=1 // pred_check
      %p131 = pneg %p130
    $region59: #{tpu_custom_call.1} parent=1 // pred_check_branch
      %133 = sbr.rel (%p131) target = $region61
    $region60: #{tpu_custom_call.1} parent=1 // pred_region
      %134 = vst [vmem:[#allocation2] sm:$0xff] 0.0
    $region61: #{tpu_custom_call.1} parent=1 // pred_fallthru
      _
    %s135 = smul.u32 0, 8
    %v136 = vlaneseq
    %v137 = vshrl.u32 %v136, 7
    %v138 = vstv %s135
    %v139 = vadd.s32 %v137, %v138
    %v140 = vld [vmem:[#allocation3] sm:$0x1]
    %v141 = vperm.slane %v140, 0
    %vm142 = vcmp.eq.s32.totalorder %v139, %v141
    %v143 = vsel %vm142, 1, 0
    %v144 = vcvt.s32.f32 %v143
    %v145 = vld [vmem:[#allocation2] sm:$0xff]
    %v146 = vld [vmem:[#allocation8] sm:$0xff]
    %v147 = vld [vmem:[#allocation8 + $0x8] sm:$0xff]
    %v148 = vld [vmem:[#allocation8 + $0x10] sm:$0xff]
    %v149 = vld [vmem:[#allocation8 + $0x18] sm:$0xff]
    %v150 = vld [vmem:[#allocation8 + $0x20] sm:$0xff]
    %v151 = vld [vmem:[#allocation8 + $0x28] sm:$0xff]
    %v152 = vld [vmem:[#allocation8 + $0x30] sm:$0xff]
    %v153 = vld [vmem:[#allocation8 + $0x38] sm:$0xff]
    %v154 = vld [vmem:[#allocation8 + $0x40] sm:$0xff]
    %v155 = vld [vmem:[#allocation8 + $0x48] sm:$0xff]
    %v156 = vld [vmem:[#allocation8 + $0x50] sm:$0xff]
    %v157 = vld [vmem:[#allocation8 + $0x58] sm:$0xff]
    %v158 = vld [vmem:[#allocation8 + $0x60] sm:$0xff]
    %v159 = vld [vmem:[#allocation8 + $0x68] sm:$0xff]
    %v160 = vld [vmem:[#allocation8 + $0x70] sm:$0xff]
    %v161 = vld [vmem:[#allocation8 + $0x78] sm:$0xff]
    %162 = vmatpush.msra.mxu0 %v161
    %163 = vmatpush.msra.mxu0 %v160
    %164 = vmatpush.msra.mxu0 %v159
    %165 = vmatpush.msra.mxu0 %v158
    %166 = vmatpush.msra.mxu0 %v157
    %167 = vmatpush.msra.mxu0 %v156
    %168 = vmatpush.msra.mxu0 %v155
    %169 = vmatpush.msra.mxu0 %v154
    %170 = vmatpush.msra.mxu0 %v153
    %171 = vmatpush.msra.mxu0 %v152
    %172 = vmatpush.msra.mxu0 %v151
    %173 = vmatpush.msra.mxu0 %v150
    %174 = vmatpush.msra.mxu0 %v149
    %175 = vmatpush.msra.mxu0 %v148
    %176 = vmatpush.msra.mxu0 %v147
    %177 = vmatpush.msra.mxu0 %v146
    %178 = vmatmul.f32.gmra.mxu0 %v144
    %v179 = vpop.f32.mrf.mxu0
    %v180 = vadd.f32 0.0, %v179
    %181 = vdwg.mxu0
    %v182 = vadd.f32 %v145, %v180
    %183 = vst [vmem:[#allocation2] sm:$0xff] %v182
    // Predicated region
    $region62: #{tpu_custom_call.1} parent=1 // pred_check
      %p184 = pneg %p130
    $region63: #{tpu_custom_call.1} parent=1 // pred_check_branch
      %186 = sbr.rel (%p184) target = $region65
    $region64: #{tpu_custom_call.1} parent=1 // pred_region
      %v187 = vld [vmem:[#allocation2] sm:$0xff]
      %v188 = vmax.f32 %v187, 1.0
      %v189 = vrcp.pop %v188
      %191 = vset.pattern.permute.xlu0 32
      %192 = vperm.xlu0 %191, %v189
      %v193 = vpop.permute.xlu0 %192
      %v195 = vmul.f32 %v187, %v193
      %v196 = vld [vmem:[#allocation6] sm:$0xff]
      %v197 = vld [vmem:[#allocation9] sm:$0xff]
      %v198 = vld [vmem:[#allocation9 + $0x8] sm:$0xff]
      %v199 = vld [vmem:[#allocation9 + $0x10] sm:$0xff]
      %v200 = vld [vmem:[#allocation9 + $0x18] sm:$0xff]
      %v201 = vld [vmem:[#allocation9 + $0x20] sm:$0xff]
      %v202 = vld [vmem:[#allocation9 + $0x28] sm:$0xff]
      %v203 = vld [vmem:[#allocation9 + $0x30] sm:$0xff]
      %v204 = vld [vmem:[#allocation9 + $0x38] sm:$0xff]
      %v205 = vld [vmem:[#allocation9 + $0x40] sm:$0xff]
      %v206 = vld [vmem:[#allocation9 + $0x48] sm:$0xff]
      %v207 = vld [vmem:[#allocation9 + $0x50] sm:$0xff]
      %v208 = vld [vmem:[#allocation9 + $0x58] sm:$0xff]
      %v209 = vld [vmem:[#allocation9 + $0x60] sm:$0xff]
      %v210 = vld [vmem:[#allocation9 + $0x68] sm:$0xff]
      %v211 = vld [vmem:[#allocation9 + $0x70] sm:$0xff]
      %v212 = vld [vmem:[#allocation9 + $0x78] sm:$0xff]
      %v213 = vld [vmem:[#allocation11] sm:$0xff]
      %v214 = vld [vmem:[#allocation11 + $0x8] sm:$0xff]
      %v215 = vld [vmem:[#allocation11 + $0x10] sm:$0xff]
      %v216 = vld [vmem:[#allocation11 + $0x18] sm:$0xff]
      %v217 = vld [vmem:[#allocation11 + $0x20] sm:$0xff]
      %v218 = vld [vmem:[#allocation11 + $0x28] sm:$0xff]
      %v219 = vld [vmem:[#allocation11 + $0x30] sm:$0xff]
      %v220 = vld [vmem:[#allocation11 + $0x38] sm:$0xff]
      %v221 = vld [vmem:[#allocation11 + $0x40] sm:$0xff]
      %v222 = vld [vmem:[#allocation11 + $0x48] sm:$0xff]
      %v223 = vld [vmem:[#allocation11 + $0x50] sm:$0xff]
      %v224 = vld [vmem:[#allocation11 + $0x58] sm:$0xff]
      %v225 = vld [vmem:[#allocation11 + $0x60] sm:$0xff]
      %v226 = vld [vmem:[#allocation11 + $0x68] sm:$0xff]
      %v227 = vld [vmem:[#allocation11 + $0x70] sm:$0xff]
      %v228 = vld [vmem:[#allocation11 + $0x78] sm:$0xff]
      %229 = vmatpush.msra.mxu0 %v228
      %230 = vmatpush.msra.mxu0 %v227
      %231 = vmatpush.msra.mxu0 %v226
      %232 = vmatpush.msra.mxu0 %v225
      %233 = vmatpush.msra.mxu0 %v224
      %234 = vmatpush.msra.mxu0 %v223
      %235 = vmatpush.msra.mxu0 %v222
      %236 = vmatpush.msra.mxu0 %v221
      %237 = vmatpush.msra.mxu0 %v220
      %238 = vmatpush.msra.mxu0 %v219
      %239 = vmatpush.msra.mxu0 %v218
      %240 = vmatpush.msra.mxu0 %v217
      %241 = vmatpush.msra.mxu0 %v216
      %242 = vmatpush.msra.mxu0 %v215
      %243 = vmatpush.msra.mxu0 %v214
      %244 = vmatpush.msra.mxu0 %v213
      %245 = vmatmul.f32.gmra.mxu0 %v195
      %v246 = vpop.f32.mrf.mxu0
      %v247 = vadd.f32 0.0, %v246
      %248 = vdwg.mxu0
      %249 = vmatpush.msra.mxu0 %v212
      %250 = vmatpush.msra.mxu0 %v211
      %251 = vmatpush.msra.mxu0 %v210
      %252 = vmatpush.msra.mxu0 %v209
      %253 = vmatpush.msra.mxu0 %v208
      %254 = vmatpush.msra.mxu0 %v207
      %255 = vmatpush.msra.mxu0 %v206
      %256 = vmatpush.msra.mxu0 %v205
      %257 = vmatpush.msra.mxu0 %v204
      %258 = vmatpush.msra.mxu0 %v203
      %259 = vmatpush.msra.mxu0 %v202
      %260 = vmatpush.msra.mxu0 %v201
      %261 = vmatpush.msra.mxu0 %v200
      %262 = vmatpush.msra.mxu0 %v199
      %263 = vmatpush.msra.mxu0 %v198
      %264 = vmatpush.msra.mxu0 %v197
      %265 = vmatmul.f32.gmra.mxu0 %v196
      %v266 = vpop.f32.mrf.mxu0
      %v267 = vadd.f32 %v247, %v266
      %268 = vdwg.mxu0
      %v269 = vld [vmem:[#allocation14] sm:$0x1]
      %v270 = vperm.slane %v269, 0
      %v271 = vadd.f32 %v267, %v270
      %272 = vadd.xlane.f32.xlu0 %v271
      %v273 = vpop.xlane.xlu0 %272
      %v274 = vmul.f32 %v273, 0.015625
      %v275 = vsub.f32 %v271, %v274
      %v276 = vlaneseq
      %v277 = vand.u32 %v276, 127
      %vm278 = vcmp.lt.s32.totalorder %v277, 64
      %v279 = vsel %vm278, 1, 0
      %v280 = vcvt.s32.f32 %v279
      %v281 = vmul.f32 %v275, %v280
      %v282 = vmul.f32 %v281, %v281
      %283 = vadd.xlane.f32.xlu0 %v282
      %v284 = vpop.xlane.xlu0 %283
      %v285 = vmul.f32 %v284, 0.015625
      %v286 = vadd.f32 %v285, 1e-05
      %v287 = vrsqrt.pop %v286
      %v288 = vmul.f32 %v287, %v286
      %v289 = vmul.f32 %v288, %v287
      %v290 = vmul.f32 0.5, %v289
      %v291 = vsub.f32 1.5, %v290
      %v292 = vmul.f32 %v287, %v291
      %vm293 = vweird.f32 %v286
      %vm294 = vweird.f32 %v287
      %vm295 = vmor %vm293, %vm294
      %v296 = vsel %vm295, %v287, %v292
      %v297 = vmul.f32 %v281, %v296
      %v298 = vld [vmem:[#allocation14 + $0x1] sm:$0x1]
      %v299 = vperm.slane %v298, 0
      %v300 = vmul.f32 %v297, %v299
      %v301 = vld [vmem:[#allocation14 + $0x2] sm:$0x1]
      %v302 = vperm.slane %v301, 0
      %v303 = vadd.f32 %v300, %v302
      %v304 = vld [vmem:[#allocation14 + $0x4] sm:$0x1]
      %vm305 = vcmp.gt.f32.partialorder %v303, 0.0
      %s307 = vtos %v304
      %v308 = vstv %s307
      %v310 = vmul.f32 %v308, %v303
      %v311 = vsel %vm305, %v303, %v310
      %v312 = vld [vmem:[#allocation12] sm:$0xff]
      %v313 = vld [vmem:[#allocation12 + $0x8] sm:$0xff]
      %v314 = vld [vmem:[#allocation12 + $0x10] sm:$0xff]
      %v315 = vld [vmem:[#allocation12 + $0x18] sm:$0xff]
      %v316 = vld [vmem:[#allocation12 + $0x20] sm:$0xff]
      %v317 = vld [vmem:[#allocation12 + $0x28] sm:$0xff]
      %v318 = vld [vmem:[#allocation12 + $0x30] sm:$0xff]
      %v319 = vld [vmem:[#allocation12 + $0x38] sm:$0xff]
      %v320 = vld [vmem:[#allocation12 + $0x40] sm:$0xff]
      %v321 = vld [vmem:[#allocation12 + $0x48] sm:$0xff]
      %v322 = vld [vmem:[#allocation12 + $0x50] sm:$0xff]
      %v323 = vld [vmem:[#allocation12 + $0x58] sm:$0xff]
      %v324 = vld [vmem:[#allocation12 + $0x60] sm:$0xff]
      %v325 = vld [vmem:[#allocation12 + $0x68] sm:$0xff]
      %v326 = vld [vmem:[#allocation12 + $0x70] sm:$0xff]
      %v327 = vld [vmem:[#allocation12 + $0x78] sm:$0xff]
      %v328 = vld [vmem:[#allocation14 + $0x3] sm:$0x1]
      %v329 = vperm.slane %v328, 0
      %330 = vmatpush.msra.mxu0 %v327
      %331 = vmatpush.msra.mxu0 %v326
      %332 = vmatpush.msra.mxu0 %v325
      %333 = vmatpush.msra.mxu0 %v324
      %334 = vmatpush.msra.mxu0 %v323
      %335 = vmatpush.msra.mxu0 %v322
      %336 = vmatpush.msra.mxu0 %v321
      %337 = vmatpush.msra.mxu0 %v320
      %338 = vmatpush.msra.mxu0 %v319
      %339 = vmatpush.msra.mxu0 %v318
      %340 = vmatpush.msra.mxu0 %v317
      %341 = vmatpush.msra.mxu0 %v316
      %342 = vmatpush.msra.mxu0 %v315
      %343 = vmatpush.msra.mxu0 %v314
      %344 = vmatpush.msra.mxu0 %v313
      %345 = vmatpush.msra.mxu0 %v312
      %346 = vmatmul.f32.gmra.mxu0 %v311
      %v347 = vpop.f32.mrf.mxu0
      %v348 = vadd.f32 %v329, %v347
      %349 = vdwg.mxu0
      %350 = vst [vmem:[#allocation15] sm:$0xff] %v348
    $region65: #{tpu_custom_call.1} parent=1 // pred_fallthru
      _
    // Predicated region
    $region66: #{tpu_custom_call.1} parent=1 // pred_check
      _
    $region67: #{tpu_custom_call.1} parent=1 // pred_check_branch
      %352 = sbr.rel (0) target = $region69
    $region68: #{tpu_custom_call.1} parent=1 // pred_region
      %354 = vsyncadd [#allocation5], 0
      %s356 = sshll.u32 [#allocation15], 4
      %s357 = int_to_ptr.vmem [resolvable:$true] %s356
      %s358 = sshll.u32 %s7, 4
      %s359 = int_to_ptr.hbm [resolvable:$true] %s358
      %361 = dma.vmem_to_hbm [thread:$0]  %s357, 128, %s359, [#allocation5]
    $region69: #{tpu_custom_call.1} parent=1 // pred_fallthru
      _
    // Predicated region
    $region70: #{tpu_custom_call.1} parent=1 // pred_check
      _
    $region71: #{tpu_custom_call.1} parent=1 // pred_check_branch
      %363 = sbr.rel (0) target = $region73
    $region72: #{tpu_custom_call.1} parent=1 // pred_region
      %365 = dma.done [#allocation5], 128
    $region73: #{tpu_custom_call.1} parent=1 // pred_fallthru
      _
    %366 = vsyncpa [#allocation4], 1
    %367 = vsyncpa [#allocation7], 1
    %368 = vsyncpa [#allocation10], 1
    %369 = vsyncpa [#allocation13], 1
    %370 = vsyncpa [#allocation5], 1

</llo_original>
